<compile_context>
chip_gen: v7x
topology: tpu7x:2x2x1
jax: 0.10.0
libtpu: 0.0.40
codegen_flags: <defaults>
</compile_context>

<pallas_src>
import jax
import jax.numpy as jnp
from jax import lax
from jax.experimental import pallas as pl
from jax.experimental.pallas import tpu as pltpu

EMB_DIM = 128          # matches NCF default emb_dim=128
H1, H2 = 128, 64       # hidden widths of the MLP


def _round_up(x, m):
    return (x + m - 1) // m * m


def _choose_tile(B, bm):
    """Pick a lane-aligned batch tile.

    Cap bm at ~half the (rounded-up) batch so the grid has >=2 steps whenever
    the batch is large enough -- with dimension_semantics=("parallel",) the
    batch grid is what feeds v7x's two TensorCores.  Floor at 128 lanes.
    """
    half = _round_up(max(-(-B // 2), 1), 128)
    bm = max(128, min(bm, half))
    b_pad = _round_up(B, bm)
    return bm, b_pad


def ncf_mlp_kernel(ue_ref, ie_ref, w1a_ref, w1b_ref, b1_ref,
                   w2_ref, b2_ref, w3_ref, b3_ref, o_ref):
    # Layer 1: split-K matmul (avoids materialising the concat), bf16 operands,
    # fp32 accumulation on the MXU.
    h1 = (jnp.dot(ue_ref[...], w1a_ref[...], preferred_element_type=jnp.float32)
          + jnp.dot(ie_ref[...], w1b_ref[...], preferred_element_type=jnp.float32)
          + b1_ref[...])
    h1 = jnp.maximum(h1, 0.0)            # ReLU; Dropout(0.3) -> identity (eval)

    # Layer 2.
    h2 = jnp.dot(h1.astype(jnp.bfloat16), w2_ref[...],
                 preferred_element_type=jnp.float32) + b2_ref[...]
    h2 = jnp.maximum(h2, 0.0)            # ReLU; Dropout(0.3) -> identity (eval)

    # Layer 3 (out_features = 1): contract H2 of the (1, H2) weight row against
    # H2 of h2 -> lane-dense (1, bm) result instead of a (bm, 1) masked-store
    # column.  Single tiny MXU pass (K=64), fp32.
    z = lax.dot_general(w3_ref[...], h2,
                        dimension_numbers=(((1,), (1,)), ((), ())),
                        preferred_element_type=jnp.float32)
    z = z + b3_ref[...]                  # (1, bm) + (1, 1) broadcast
    o_ref[...] = jax.nn.sigmoid(z)       # (1, bm)


def ncf_mlp(ue, ie, prep, *, n_valid, bm):
    """Fused MLP over already-padded bf16 embeddings.

    ue/ie: (b_pad, EMB) bf16 with b_pad % bm == 0.  Returns (n_valid,) f32.
    """
    b_pad, emb = ue.shape
    assert b_pad % bm == 0 and bm % 128 == 0
    grid = (b_pad // bm,)
    fixed = lambda i: (0, 0)

    # Advisory cost hint so XLA schedules the surrounding gather/pad ops well.
    bytes_accessed = (2 * b_pad * emb * 2                    # bf16 activation tiles
                      + (2 * emb * H1 + H1 * H2) * 2         # bf16 weights
                      + (H1 + 2 * H2 + 1) * 4                # f32 biases + w3 row
                      + b_pad * 4)                           # f32 output
    flops = b_pad * 2 * (2 * emb * H1 + H1 * H2 + H2)

    out = pl.pallas_call(
        ncf_mlp_kernel,
        out_shape=jax.ShapeDtypeStruct((1, b_pad), jnp.float32),
        grid_spec=pltpu.PrefetchScalarGridSpec(
            num_scalar_prefetch=0,
            grid=grid,
            in_specs=[
                pl.BlockSpec((bm, emb), lambda i: (i, 0)),   # user-emb tile (bf16)
                pl.BlockSpec((bm, emb), lambda i: (i, 0)),   # item-emb tile (bf16)
                pl.BlockSpec((emb, H1), fixed),              # W1[:EMB]   (bf16)
                pl.BlockSpec((emb, H1), fixed),              # W1[EMB:]   (bf16)
                pl.BlockSpec((1, H1), fixed),                # b1         (f32)
                pl.BlockSpec((H1, H2), fixed),               # W2         (bf16)
                pl.BlockSpec((1, H2), fixed),                # b2         (f32)
                pl.BlockSpec((1, H2), fixed),                # w3 row     (f32)
                pl.BlockSpec((1, 1), fixed),                 # b3         (f32)
            ],
            out_specs=pl.BlockSpec((1, bm), lambda i: (0, i)),   # lane-dense rows
        ),
        compiler_params=pltpu.CompilerParams(
            dimension_semantics=("parallel",),
            vmem_limit_bytes=48 * 1024 * 1024),
        cost_estimate=pl.CostEstimate(
            flops=flops, transcendentals=b_pad, bytes_accessed=bytes_accessed),
    )(ue, ie, prep["w1a"], prep["w1b"], prep["b1"],
      prep["w2"], prep["b2"], prep["w3"], prep["b3"])
    return out[0, :n_valid]


def prepare_inference_params(params):
    """One-time cast/split of parameters for the inference kernel."""
    w1 = params["w1"]
    return {
        "user_emb": params["user_emb"].astype(jnp.bfloat16),
        "item_emb": params["item_emb"].astype(jnp.bfloat16),
        "w1a": w1[:EMB_DIM].astype(jnp.bfloat16),
        "w1b": w1[EMB_DIM:].astype(jnp.bfloat16),
        "b1": params["b1"],
        "w2": params["w2"].astype(jnp.bfloat16),
        "b2": params["b2"],
        "w3": params["w3"],
        "b3": params["b3"],
    }


def ncf_forward(u, i, prep, *, bm=2048):
    """Full NCF forward (inference). u, i: (B,) int32. Returns (B,) f32."""
    B = u.shape[0]
    bm, b_pad = _choose_tile(B, bm)
    if b_pad != B:
        # Pad the cheap int32 index vectors (not the gathered activations):
        # padded rows gather a valid row (index 0) and are sliced off at the end.
        pad = b_pad - B
        u = jnp.pad(u, (0, pad))
        i = jnp.pad(i, (0, pad))
    ue = jnp.take(prep["user_emb"], u, axis=0)    # (b_pad, EMB) bf16
    ie = jnp.take(prep["item_emb"], i, axis=0)    # (b_pad, EMB) bf16
    return ncf_mlp(ue, ie, prep, n_valid=B, bm=bm)


def ncf_reference(u, i, params):
    # Pure-JAX fp32 reference (mirrors the PyTorch module in eval mode).
    ue = jnp.take(params["user_emb"], u, axis=0)
    ie = jnp.take(params["item_emb"], i, axis=0)
    x = jnp.concatenate([ue, ie], axis=1)
    h1 = jnp.maximum(x @ params["w1"] + params["b1"], 0.0)
    h2 = jnp.maximum(h1 @ params["w2"] + params["b2"], 0.0)
    z = h2 @ params["w3"].T + params["b3"]
    return jax.nn.sigmoid(z).squeeze(-1)


def init_params(key, n_users, n_items, emb_dim=EMB_DIM):
    ks = jax.random.split(key, 8)

    def lin(kw, kb, fan_in, fan_out, w_shape=None):
        bound = 1.0 / jnp.sqrt(fan_in)
        shape = (fan_in, fan_out) if w_shape is None else w_shape
        w = jax.random.uniform(kw, shape, jnp.float32, -bound, bound)
        b = jax.random.uniform(kb, (1, fan_out), jnp.float32, -bound, bound)
        return w, b

    w1, b1 = lin(ks[2], ks[3], 2 * emb_dim, H1)               # (256, 128), (1, 128)
    w2, b2 = lin(ks[4], ks[5], H1, H2)                        # (128, 64),  (1, 64)
    w3, b3 = lin(ks[6], ks[7], H2, 1, w_shape=(1, H2))        # (1, 64),    (1, 1)
    return {
        "user_emb": jax.random.normal(ks[0], (n_users, emb_dim), jnp.float32),
        "item_emb": jax.random.normal(ks[1], (n_items, emb_dim), jnp.float32),
        "w1": w1, "b1": b1, "w2": w2, "b2": b2, "w3": w3, "b3": b3,
    }


if __name__ == "__main__":
    key = jax.random.PRNGKey(0)
    kp, ku, ki = jax.random.split(key, 3)
    n_users, n_items = 10, 20
    params = init_params(kp, n_users, n_items)
    prep = prepare_inference_params(params)   # one-time bf16 cast / W1 split

    # Small case (batch=8): tile clamps to bm=128, indices padded to 128.
    batch = 8
    u = jax.random.randint(ku, (batch,), 0, n_users, dtype=jnp.int32)
    i = jax.random.randint(ki, (batch,), 0, n_items, dtype=jnp.int32)
    out = jax.block_until_ready(ncf_forward(u, i, prep))
    ref = ncf_reference(u, i, params)
    assert out.shape == (batch,)
    assert jnp.allclose(out, ref, atol=2e-2), float(jnp.max(jnp.abs(out - ref)))

    # Second case: non-multiple batch, multi-tile grid (bm clamps to 256,
    # b_pad=512, grid=2) -- exercises index padding + >=2 grid steps.
    batch2 = 300
    u2 = jax.random.randint(jax.random.fold_in(ku, 1), (batch2,), 0, n_users,
                            dtype=jnp.int32)
    i2 = jax.random.randint(jax.random.fold_in(ki, 1), (batch2,), 0, n_items,
                            dtype=jnp.int32)
    out2 = jax.block_until_ready(ncf_forward(u2, i2, prep))
    ref2 = ncf_reference(u2, i2, params)
    assert out2.shape == (batch2,)
    assert jnp.allclose(out2, ref2, atol=2e-2), float(jnp.max(jnp.abs(out2 - ref2)))

    print("KERNEL_OK")
</pallas_src>

<mosaic_0001>
module attributes {stable_mosaic.version = 11 : i64} {
  func.func @ncf_mlp_kernel(%arg0: i32, %arg1: memref<128x128xbf16, #tpu.memory_space<vmem>>, %arg2: memref<128x128xbf16, #tpu.memory_space<vmem>>, %arg3: memref<128x128xbf16, #tpu.memory_space<vmem>>, %arg4: memref<128x128xbf16, #tpu.memory_space<vmem>>, %arg5: memref<1x128xf32, #tpu.memory_space<vmem>>, %arg6: memref<128x64xbf16, #tpu.memory_space<vmem>>, %arg7: memref<1x64xf32, #tpu.memory_space<vmem>>, %arg8: memref<1x64xf32, #tpu.memory_space<vmem>>, %arg9: memref<1x1xf32, #tpu.memory_space<vmem>>, %arg10: memref<1x128xf32, #tpu.memory_space<vmem>>) attributes {dimension_semantics = [#tpu.dimension_semantics<parallel>], iteration_bounds = array<i64: 1>, scalar_prefetch = 0 : i64, scratch_operands = 0 : i64, tpu.core_type = #tpu.core_type<tc>, window_params = [{transform_indices = @transform_0, window_bounds = array<i64: 128, 128>}, {transform_indices = @transform_1, window_bounds = array<i64: 128, 128>}, {pipeline_mode = #tpu.pipeline_mode<synchronous>, transform_indices = @transform_2, window_bounds = array<i64: 128, 128>}, {pipeline_mode = #tpu.pipeline_mode<synchronous>, transform_indices = @transform_3, window_bounds = array<i64: 128, 128>}, {pipeline_mode = #tpu.pipeline_mode<synchronous>, transform_indices = @transform_4, window_bounds = array<i64: 1, 128>}, {pipeline_mode = #tpu.pipeline_mode<synchronous>, transform_indices = @transform_5, window_bounds = array<i64: 128, 64>}, {pipeline_mode = #tpu.pipeline_mode<synchronous>, transform_indices = @transform_6, window_bounds = array<i64: 1, 64>}, {pipeline_mode = #tpu.pipeline_mode<synchronous>, transform_indices = @transform_7, window_bounds = array<i64: 1, 64>}, {pipeline_mode = #tpu.pipeline_mode<synchronous>, transform_indices = @transform_8, window_bounds = array<i64: 1, 1>}, {transform_indices = @transform_9, window_bounds = array<i64: 1, 128>}]} {
    %c0 = arith.constant 0 : index
    %c0_0 = arith.constant 0 : index
    %0 = vector.load %arg1[%c0, %c0_0] : memref<128x128xbf16, #tpu.memory_space<vmem>>, vector<128x128xbf16>
    %c0_1 = arith.constant 0 : index
    %c0_2 = arith.constant 0 : index
    %1 = vector.load %arg3[%c0_1, %c0_2] : memref<128x128xbf16, #tpu.memory_space<vmem>>, vector<128x128xbf16>
    %cst = arith.constant dense<0.000000e+00> : vector<128x128xf32>
    %2 = tpu.matmul %0, %1, %cst {dimension_numbers = #tpu.dot_dimension_numbers<[1], [0], [0], [1], [0, 0, 1, 1], [], []>} : vector<128x128xbf16>, vector<128x128xbf16>, vector<128x128xf32> -> vector<128x128xf32>
    %c0_3 = arith.constant 0 : index
    %c0_4 = arith.constant 0 : index
    %3 = vector.load %arg2[%c0_3, %c0_4] : memref<128x128xbf16, #tpu.memory_space<vmem>>, vector<128x128xbf16>
    %c0_5 = arith.constant 0 : index
    %c0_6 = arith.constant 0 : index
    %4 = vector.load %arg4[%c0_5, %c0_6] : memref<128x128xbf16, #tpu.memory_space<vmem>>, vector<128x128xbf16>
    %cst_7 = arith.constant dense<0.000000e+00> : vector<128x128xf32>
    %5 = tpu.matmul %3, %4, %cst_7 {dimension_numbers = #tpu.dot_dimension_numbers<[1], [0], [0], [1], [0, 0, 1, 1], [], []>} : vector<128x128xbf16>, vector<128x128xbf16>, vector<128x128xf32> -> vector<128x128xf32>
    %6 = arith.addf %2, %5 : vector<128x128xf32>
    %c0_8 = arith.constant 0 : index
    %c0_9 = arith.constant 0 : index
    %7 = vector.load %arg5[%c0_8, %c0_9] : memref<1x128xf32, #tpu.memory_space<vmem>>, vector<1x128xf32>
    %8 = vector.broadcast %7 : vector<1x128xf32> to vector<128x128xf32>
    %9 = arith.addf %6, %8 : vector<128x128xf32>
    %cst_10 = arith.constant 0.000000e+00 : f32
    %10 = vector.broadcast %cst_10 : f32 to vector<128x128xf32>
    %11 = arith.maximumf %9, %10 : vector<128x128xf32>
    %12 = arith.truncf %11 : vector<128x128xf32> to vector<128x128xbf16>
    %c0_11 = arith.constant 0 : index
    %c0_12 = arith.constant 0 : index
    %13 = vector.load %arg6[%c0_11, %c0_12] : memref<128x64xbf16, #tpu.memory_space<vmem>>, vector<128x64xbf16>
    %cst_13 = arith.constant dense<0.000000e+00> : vector<128x64xf32>
    %14 = tpu.matmul %12, %13, %cst_13 {dimension_numbers = #tpu.dot_dimension_numbers<[1], [0], [0], [1], [0, 0, 1, 1], [], []>} : vector<128x128xbf16>, vector<128x64xbf16>, vector<128x64xf32> -> vector<128x64xf32>
    %c0_14 = arith.constant 0 : index
    %c0_15 = arith.constant 0 : index
    %15 = vector.load %arg7[%c0_14, %c0_15] : memref<1x64xf32, #tpu.memory_space<vmem>>, vector<1x64xf32>
    %16 = vector.broadcast %15 : vector<1x64xf32> to vector<128x64xf32>
    %17 = arith.addf %14, %16 : vector<128x64xf32>
    %cst_16 = arith.constant 0.000000e+00 : f32
    %18 = vector.broadcast %cst_16 : f32 to vector<128x64xf32>
    %19 = arith.maximumf %17, %18 : vector<128x64xf32>
    %c0_17 = arith.constant 0 : index
    %c0_18 = arith.constant 0 : index
    %20 = vector.load %arg8[%c0_17, %c0_18] : memref<1x64xf32, #tpu.memory_space<vmem>>, vector<1x64xf32>
    %cst_19 = arith.constant dense<0.000000e+00> : vector<1x128xf32>
    %21 = tpu.matmul %20, %19, %cst_19 {dimension_numbers = #tpu.dot_dimension_numbers<[1], [1], [0], [0], [0, 0, 1, 0], [], []>} : vector<1x64xf32>, vector<128x64xf32>, vector<1x128xf32> -> vector<1x128xf32>
    %c0_20 = arith.constant 0 : index
    %c0_21 = arith.constant 0 : index
    %22 = vector.load %arg9[%c0_20, %c0_21] : memref<1x1xf32, #tpu.memory_space<vmem>>, vector<1x1xf32>
    %23 = vector.broadcast %22 : vector<1x1xf32> to vector<1x128xf32>
    %24 = arith.addf %21, %23 : vector<1x128xf32>
    %25 = arith.negf %24 : vector<1x128xf32>
    %26 = math.exp %25 : vector<1x128xf32>
    %cst_22 = arith.constant 1.000000e+00 : f32
    %27 = vector.broadcast %cst_22 : f32 to vector<1x128xf32>
    %28 = arith.addf %27, %26 : vector<1x128xf32>
    %29 = arith.divf %27, %28 : vector<1x128xf32>
    %c0_23 = arith.constant 0 : index
    %c0_24 = arith.constant 0 : index
    %30 = vector.load %arg10[%c0_23, %c0_24] : memref<1x128xf32, #tpu.memory_space<vmem>>, vector<1x128xf32>
    tpu.vector_store %arg10[%c0_23, %c0_24], %29 {strides = array<i32>} : memref<1x128xf32, #tpu.memory_space<vmem>>, vector<1x128xf32>,
    return
  }
  func.func @transform_0(%arg0: i32) -> (i32, i32) {
    %c0_i32 = arith.constant 0 : i32
    %c0_i32_0 = arith.constant 0 : i32
    return %arg0, %c0_i32 : i32, i32
  }
  func.func @transform_1(%arg0: i32) -> (i32, i32) {
    %c0_i32 = arith.constant 0 : i32
    %c0_i32_0 = arith.constant 0 : i32
    return %arg0, %c0_i32 : i32, i32
  }
  func.func @transform_2(%arg0: i32) -> (i32, i32) {
    %c0_i32 = arith.constant 0 : i32
    %c0_i32_0 = arith.constant 0 : i32
    %c0_i32_1 = arith.constant 0 : i32
    return %c0_i32, %c0_i32_0 : i32, i32
  }
  func.func @transform_3(%arg0: i32) -> (i32, i32) {
    %c0_i32 = arith.constant 0 : i32
    %c0_i32_0 = arith.constant 0 : i32
    %c0_i32_1 = arith.constant 0 : i32
    return %c0_i32, %c0_i32_0 : i32, i32
  }
  func.func @transform_4(%arg0: i32) -> (i32, i32) {
    %c0_i32 = arith.constant 0 : i32
    %c0_i32_0 = arith.constant 0 : i32
    %c0_i32_1 = arith.constant 0 : i32
    return %c0_i32, %c0_i32_0 : i32, i32
  }
  func.func @transform_5(%arg0: i32) -> (i32, i32) {
    %c0_i32 = arith.constant 0 : i32
    %c0_i32_0 = arith.constant 0 : i32
    %c0_i32_1 = arith.constant 0 : i32
    return %c0_i32, %c0_i32_0 : i32, i32
  }
  func.func @transform_6(%arg0: i32) -> (i32, i32) {
    %c0_i32 = arith.constant 0 : i32
    %c0_i32_0 = arith.constant 0 : i32
    %c0_i32_1 = arith.constant 0 : i32
    return %c0_i32, %c0_i32_0 : i32, i32
  }
  func.func @transform_7(%arg0: i32) -> (i32, i32) {
    %c0_i32 = arith.constant 0 : i32
    %c0_i32_0 = arith.constant 0 : i32
    %c0_i32_1 = arith.constant 0 : i32
    return %c0_i32, %c0_i32_0 : i32, i32
  }
  func.func @transform_8(%arg0: i32) -> (i32, i32) {
    %c0_i32 = arith.constant 0 : i32
    %c0_i32_0 = arith.constant 0 : i32
    %c0_i32_1 = arith.constant 0 : i32
    return %c0_i32, %c0_i32_0 : i32, i32
  }
  func.func @transform_9(%arg0: i32) -> (i32, i32) {
    %c0_i32 = arith.constant 0 : i32
    %c0_i32_0 = arith.constant 0 : i32
    return %c0_i32, %arg0 : i32, i32
  }
}

</mosaic_0001>

<llo_original>
// kernel: tpu_custom_call.1
$region0: #{tpu_custom_call.1}
  #allocation0 [shape = 'u32[]', space=smem, size = 0x4, offset = 0x4, fixed_abs, tag = 'smem constant byte address 0x4 - core index']
  #allocation1 [shape = 'u32[144,128]{1,0:T(1,128)}', space=vmem, size = 0x12000, scoped, tag = 'internal scratch']
  #allocation2 [shape = 'f32[1,1]{1,0:T(1,128)S(1)}', space=vmem, size = 0x200, scoped, tag = 'scoped memory for tpu_custom_call.1']
  %s0 = inlined_call_operand.vmem [shape: bf16[128,128], index: 0, kind: input, shape index: {}]
  %s1 = inlined_call_operand.hbm [shape: bf16[128,128], index: 1, kind: input, shape index: {}]
  %s2 = inlined_call_operand.hbm [shape: bf16[128,128], index: 2, kind: input, shape index: {}]
  %s3 = inlined_call_operand.hbm [shape: bf16[128,128], index: 3, kind: input, shape index: {}]
  %s4 = inlined_call_operand.vmem [shape: f32[1,128], index: 4, kind: input, shape index: {}]
  %s5 = inlined_call_operand.vmem [shape: bf16[128,64], index: 5, kind: input, shape index: {}]
  %s6 = inlined_call_operand.vmem [shape: f32[1,64], index: 6, kind: input, shape index: {}]
  %s7 = inlined_call_operand.vmem [shape: f32[1,64], index: 7, kind: input, shape index: {}]
  %s8 = inlined_call_operand.<no memory space> [shape: f32[1,1], index: 8, kind: input, shape index: {}]
  %s9 = inlined_call_operand.hbm [shape: f32[1,128], index: 9, kind: output, shape index: {}]
  %s10 = sld [smem:[#allocation0]]
  $region58: #{tpu_custom_call.1} parent=0
    _
  %s12 = ssub.s32 1, %s10
  %s13 = scalar_select 0, %s12, %s10
  %v14 = vstv %s8
  %15 = vst [vmem:[#allocation2] sm:$0x1] %v14
  $region1: #{tpu_custom_call.1} parent=0
    #allocation3 [shape = 'u8[32768]{0}', space=vmem, size = 0x8000, scoped, tag = 'input window, operand 1, single buffered']
    #allocation4 [shape = 's32[1]{0}', space=sflag, size = 0x4, scoped, tag = 'scoped memory for tpu_custom_call.1']
    #allocation5 [shape = 's32[1]{0}', space=sflag, size = 0x4, scoped, tag = 'scoped memory for tpu_custom_call.1']
    #allocation6 [shape = 'u8[32768]{0}', space=vmem, size = 0x8000, scoped, tag = 'input window, operand 2, single buffered']
    #allocation7 [shape = 's32[1]{0}', space=sflag, size = 0x4, scoped, tag = 'scoped memory for tpu_custom_call.1']
    #allocation8 [shape = 'u8[32768]{0}', space=vmem, size = 0x8000, scoped, tag = 'input window, operand 3, single buffered']
    #allocation9 [shape = 'u8[512]{0}', space=vmem, size = 0x400, scoped, tag = 'output window, operand 0, single buffered']
    %16 = vsyncpa [#allocation4], 0
    %17 = vsyncpa [#allocation7], 0
    %18 = vsyncpa [#allocation5], 0
    // Predicated region
    $region2: #{tpu_custom_call.1} parent=1 // pred_check
      _
    $region3: #{tpu_custom_call.1} parent=1 // pred_check_branch
      %20 = sbr.rel (0) target = $region5
    $region4: #{tpu_custom_call.1} parent=1 // pred_region
      _
    $region5: #{tpu_custom_call.1} parent=1 // pred_fallthru
      _
    // Predicated region
    $region6: #{tpu_custom_call.1} parent=1 // pred_check
      _
    $region7: #{tpu_custom_call.1} parent=1 // pred_check_branch
      %22 = sbr.rel (0) target = $region9
    $region8: #{tpu_custom_call.1} parent=1 // pred_region
      %s24 = ssub.s32 1024, 1024
      %25 = vsyncadd [#allocation4], %s24
      %s26 = sshll.u32 [#allocation3], 4
      %s27 = int_to_ptr.vmem [resolvable:$true] %s26
      %32 = dma.hbm_to_vmem [thread:$0]  %s1, 1024, %s27, [#allocation4], 64, 64, 4
    $region9: #{tpu_custom_call.1} parent=1 // pred_fallthru
      _
    // Predicated region
    $region10: #{tpu_custom_call.1} parent=1 // pred_check
      _
    $region11: #{tpu_custom_call.1} parent=1 // pred_check_branch
      %34 = sbr.rel (0) target = $region13
    $region12: #{tpu_custom_call.1} parent=1 // pred_region
      %s36 = ssub.s32 1024, 1024
      %37 = vsyncadd [#allocation7], %s36
      %s38 = sshll.u32 [#allocation6], 4
      %s39 = int_to_ptr.vmem [resolvable:$true] %s38
      %44 = dma.hbm_to_vmem [thread:$0]  %s2, 1024, %s39, [#allocation7], 64, 64, 4
    $region13: #{tpu_custom_call.1} parent=1 // pred_fallthru
      _
    // Predicated region
    $region14: #{tpu_custom_call.1} parent=1 // pred_check
      _
    $region15: #{tpu_custom_call.1} parent=1 // pred_check_branch
      %46 = sbr.rel (0) target = $region17
    $region16: #{tpu_custom_call.1} parent=1 // pred_region
      %s48 = ssub.s32 1024, 1024
      %49 = vsyncadd [#allocation7], %s48
      %s50 = sshll.u32 [#allocation8], 4
      %s51 = int_to_ptr.vmem [resolvable:$true] %s50
      %56 = dma.hbm_to_vmem [thread:$0]  %s3, 1024, %s51, [#allocation7], 64, 64, 4
    $region17: #{tpu_custom_call.1} parent=1 // pred_fallthru
      _
    // Predicated region
    $region18: #{tpu_custom_call.1} parent=1 // pred_check
      _
    $region19: #{tpu_custom_call.1} parent=1 // pred_check_branch
      %58 = sbr.rel (0) target = $region21
    $region20: #{tpu_custom_call.1} parent=1 // pred_region
      _
    $region21: #{tpu_custom_call.1} parent=1 // pred_fallthru
      _
    // Predicated region
    $region22: #{tpu_custom_call.1} parent=1 // pred_check
      _
    $region23: #{tpu_custom_call.1} parent=1 // pred_check_branch
      %60 = sbr.rel (0) target = $region25
    $region24: #{tpu_custom_call.1} parent=1 // pred_region
      _
    $region25: #{tpu_custom_call.1} parent=1 // pred_fallthru
      _
    // Predicated region
    $region26: #{tpu_custom_call.1} parent=1 // pred_check
      _
    $region27: #{tpu_custom_call.1} parent=1 // pred_check_branch
      %62 = sbr.rel (0) target = $region29
    $region28: #{tpu_custom_call.1} parent=1 // pred_region
      _
    $region29: #{tpu_custom_call.1} parent=1 // pred_fallthru
      _
    // Predicated region
    $region30: #{tpu_custom_call.1} parent=1 // pred_check
      _
    $region31: #{tpu_custom_call.1} parent=1 // pred_check_branch
      %64 = sbr.rel (0) target = $region33
    $region32: #{tpu_custom_call.1} parent=1 // pred_region
      _
    $region33: #{tpu_custom_call.1} parent=1 // pred_fallthru
      _
    // Predicated region
    $region34: #{tpu_custom_call.1} parent=1 // pred_check
      _
    $region35: #{tpu_custom_call.1} parent=1 // pred_check_branch
      %66 = sbr.rel (0) target = $region37
    $region36: #{tpu_custom_call.1} parent=1 // pred_region
      _
    $region37: #{tpu_custom_call.1} parent=1 // pred_fallthru
      _
    // Predicated region
    $region38: #{tpu_custom_call.1} parent=1 // pred_check
      _
    $region39: #{tpu_custom_call.1} parent=1 // pred_check_branch
      %68 = sbr.rel (0) target = $region41
    $region40: #{tpu_custom_call.1} parent=1 // pred_region
      %69 = dma.done [#allocation4], 1024
    $region41: #{tpu_custom_call.1} parent=1 // pred_fallthru
      _
    // Predicated region
    $region42: #{tpu_custom_call.1} parent=1 // pred_check
      _
    $region43: #{tpu_custom_call.1} parent=1 // pred_check_branch
      %71 = sbr.rel (0) target = $region45
    $region44: #{tpu_custom_call.1} parent=1 // pred_region
      %72 = dma.done [#allocation7], 1024
    $region45: #{tpu_custom_call.1} parent=1 // pred_fallthru
      _
    // Predicated region
    $region46: #{tpu_custom_call.1} parent=1 // pred_check
      _
    $region47: #{tpu_custom_call.1} parent=1 // pred_check_branch
      %74 = sbr.rel (0) target = $region49
    $region48: #{tpu_custom_call.1} parent=1 // pred_region
      %75 = dma.done [#allocation7], 1024
    $region49: #{tpu_custom_call.1} parent=1 // pred_fallthru
      _
    %v77 = vld [vmem:[%s0] sm:$0xf]
    %v78 = vld [vmem:[%s0 + $0x4] sm:$0xf]
    %v79 = vld [vmem:[%s0 + $0x8] sm:$0xf]
    %v80 = vld [vmem:[%s0 + $0xc] sm:$0xf]
    %v81 = vld [vmem:[%s0 + $0x10] sm:$0xf]
    %v82 = vld [vmem:[%s0 + $0x14] sm:$0xf]
    %v83 = vld [vmem:[%s0 + $0x18] sm:$0xf]
    %v84 = vld [vmem:[%s0 + $0x1c] sm:$0xf]
    %v85 = vld [vmem:[%s0 + $0x20] sm:$0xf]
    %v86 = vld [vmem:[%s0 + $0x24] sm:$0xf]
    %v87 = vld [vmem:[%s0 + $0x28] sm:$0xf]
    %v88 = vld [vmem:[%s0 + $0x2c] sm:$0xf]
    %v89 = vld [vmem:[%s0 + $0x30] sm:$0xf]
    %v90 = vld [vmem:[%s0 + $0x34] sm:$0xf]
    %v91 = vld [vmem:[%s0 + $0x38] sm:$0xf]
    %v92 = vld [vmem:[%s0 + $0x3c] sm:$0xf]
    %v93 = vld [vmem:[#allocation6] sm:$0xf]
    %v94 = vld [vmem:[#allocation6 + $0x4] sm:$0xf]
    %v95 = vld [vmem:[#allocation6 + $0x8] sm:$0xf]
    %v96 = vld [vmem:[#allocation6 + $0xc] sm:$0xf]
    %v97 = vld [vmem:[#allocation6 + $0x10] sm:$0xf]
    %v98 = vld [vmem:[#allocation6 + $0x14] sm:$0xf]
    %v99 = vld [vmem:[#allocation6 + $0x18] sm:$0xf]
    %v100 = vld [vmem:[#allocation6 + $0x1c] sm:$0xf]
    %v101 = vld [vmem:[#allocation6 + $0x20] sm:$0xf]
    %v102 = vld [vmem:[#allocation6 + $0x24] sm:$0xf]
    %v103 = vld [vmem:[#allocation6 + $0x28] sm:$0xf]
    %v104 = vld [vmem:[#allocation6 + $0x2c] sm:$0xf]
    %v105 = vld [vmem:[#allocation6 + $0x30] sm:$0xf]
    %v106 = vld [vmem:[#allocation6 + $0x34] sm:$0xf]
    %v107 = vld [vmem:[#allocation6 + $0x38] sm:$0xf]
    %v108 = vld [vmem:[#allocation6 + $0x3c] sm:$0xf]
    %v109 = vld [vmem:[#allocation3] sm:$0xf]
    %v110 = vld [vmem:[#allocation3 + $0x4] sm:$0xf]
    %v111 = vld [vmem:[#allocation3 + $0x8] sm:$0xf]
    %v112 = vld [vmem:[#allocation3 + $0xc] sm:$0xf]
    %v113 = vld [vmem:[#allocation3 + $0x10] sm:$0xf]
    %v114 = vld [vmem:[#allocation3 + $0x14] sm:$0xf]
    %v115 = vld [vmem:[#allocation3 + $0x18] sm:$0xf]
    %v116 = vld [vmem:[#allocation3 + $0x1c] sm:$0xf]
    %v117 = vld [vmem:[#allocation3 + $0x20] sm:$0xf]
    %v118 = vld [vmem:[#allocation3 + $0x24] sm:$0xf]
    %v119 = vld [vmem:[#allocation3 + $0x28] sm:$0xf]
    %v120 = vld [vmem:[#allocation3 + $0x2c] sm:$0xf]
    %v121 = vld [vmem:[#allocation3 + $0x30] sm:$0xf]
    %v122 = vld [vmem:[#allocation3 + $0x34] sm:$0xf]
    %v123 = vld [vmem:[#allocation3 + $0x38] sm:$0xf]
    %v124 = vld [vmem:[#allocation3 + $0x3c] sm:$0xf]
    %v125 = vld [vmem:[#allocation8] sm:$0xf]
    %v126 = vld [vmem:[#allocation8 + $0x4] sm:$0xf]
    %v127 = vld [vmem:[#allocation8 + $0x8] sm:$0xf]
    %v128 = vld [vmem:[#allocation8 + $0xc] sm:$0xf]
    %v129 = vld [vmem:[#allocation8 + $0x10] sm:$0xf]
    %v130 = vld [vmem:[#allocation8 + $0x14] sm:$0xf]
    %v131 = vld [vmem:[#allocation8 + $0x18] sm:$0xf]
    %v132 = vld [vmem:[#allocation8 + $0x1c] sm:$0xf]
    %v133 = vld [vmem:[#allocation8 + $0x20] sm:$0xf]
    %v134 = vld [vmem:[#allocation8 + $0x24] sm:$0xf]
    %v135 = vld [vmem:[#allocation8 + $0x28] sm:$0xf]
    %v136 = vld [vmem:[#allocation8 + $0x2c] sm:$0xf]
    %v137 = vld [vmem:[#allocation8 + $0x30] sm:$0xf]
    %v138 = vld [vmem:[#allocation8 + $0x34] sm:$0xf]
    %v139 = vld [vmem:[#allocation8 + $0x38] sm:$0xf]
    %v140 = vld [vmem:[#allocation8 + $0x3c] sm:$0xf]
    %v157 = vunpack.c.l.b16 %v109
    %v158 = vunpack.c.l.b16 %v110
    %v159 = vunpack.c.l.b16 %v111
    %v160 = vunpack.c.l.b16 %v112
    %v161 = vunpack.c.l.b16 %v113
    %v162 = vunpack.c.l.b16 %v114
    %v163 = vunpack.c.l.b16 %v115
    %v164 = vunpack.c.l.b16 %v116
    %v165 = vunpack.c.l.b16 %v117
    %v166 = vunpack.c.l.b16 %v118
    %v167 = vunpack.c.l.b16 %v119
    %v168 = vunpack.c.l.b16 %v120
    %v169 = vunpack.c.l.b16 %v121
    %v170 = vunpack.c.l.b16 %v122
    %v171 = vunpack.c.l.b16 %v123
    %v172 = vunpack.c.l.b16 %v124
    %v173 = vpack.c.b16 %v158, %v157
    %v174 = vpack.c.b16 %v160, %v159
    %v175 = vpack.c.b16 %v162, %v161
    %v176 = vpack.c.b16 %v164, %v163
    %v177 = vpack.c.b16 %v166, %v165
    %v178 = vpack.c.b16 %v168, %v167
    %v179 = vpack.c.b16 %v170, %v169
    %v180 = vpack.c.b16 %v172, %v171
    %v205 = vunpack.c.l.b16 %v125
    %v206 = vunpack.c.l.b16 %v126
    %v207 = vunpack.c.l.b16 %v127
    %v208 = vunpack.c.l.b16 %v128
    %v209 = vunpack.c.l.b16 %v129
    %v210 = vunpack.c.l.b16 %v130
    %v211 = vunpack.c.l.b16 %v131
    %v212 = vunpack.c.l.b16 %v132
    %v213 = vunpack.c.l.b16 %v133
    %v214 = vunpack.c.l.b16 %v134
    %v215 = vunpack.c.l.b16 %v135
    %v216 = vunpack.c.l.b16 %v136
    %v217 = vunpack.c.l.b16 %v137
    %v218 = vunpack.c.l.b16 %v138
    %v219 = vunpack.c.l.b16 %v139
    %v220 = vunpack.c.l.b16 %v140
    %v221 = vpack.c.b16 %v206, %v205
    %v222 = vpack.c.b16 %v208, %v207
    %v223 = vpack.c.b16 %v210, %v209
    %v224 = vpack.c.b16 %v212, %v211
    %v225 = vpack.c.b16 %v214, %v213
    %v226 = vpack.c.b16 %v216, %v215
    %v227 = vpack.c.b16 %v218, %v217
    %v228 = vpack.c.b16 %v220, %v219
    %237 = vmatprep.subr.bf16.mxu0 0
    %238 = vmatpush1.bf16.msra.mxu0 %v221
    %239 = vmatprep.subr.bf16.mxu0 0
    %240 = vmatpush1.bf16.msra.mxu0 %v222
    %241 = vmatprep.subr.bf16.mxu0 0
    %242 = vmatpush1.bf16.msra.mxu0 %v223
    %243 = vmatprep.subr.bf16.mxu0 0
    %244 = vmatpush1.bf16.msra.mxu0 %v224
    %245 = vmatprep.subr.bf16.mxu0 0
    %246 = vmatpush1.bf16.msra.mxu0 %v225
    %247 = vmatprep.subr.bf16.mxu0 0
    %248 = vmatpush1.bf16.msra.mxu0 %v226
    %249 = vmatprep.subr.bf16.mxu0 0
    %250 = vmatpush1.bf16.msra.mxu0 %v227
    %251 = vmatprep.subr.bf16.mxu0 0
    %252 = vmatpush1.bf16.msra.mxu0 %v228
    %253 = vmatprep.subr.bf16.mxu0 0
    %254 = vmatpush1.bf16.msra.mxu0 0
    %255 = vmatprep.subr.bf16.mxu0 0
    %256 = vmatpush1.bf16.msra.mxu0 0
    %257 = vmatprep.subr.bf16.mxu0 0
    %258 = vmatpush1.bf16.msra.mxu0 0
    %259 = vmatprep.subr.bf16.mxu0 0
    %260 = vmatpush1.bf16.msra.mxu0 0
    %261 = vmatprep.subr.bf16.mxu0 0
    %262 = vmatpush1.bf16.msra.mxu0 0
    %263 = vmatprep.subr.bf16.mxu0 0
    %264 = vmatpush1.bf16.msra.mxu0 0
    %265 = vmatprep.subr.bf16.mxu0 0
    %266 = vmatpush1.bf16.msra.mxu0 0
    %267 = vmatprep.subr.bf16.mxu0 0
    %268 = vmatpush1.bf16.msra.mxu0 0
    %269 = vmatprep.mubr.bf16.mxu0 0
    %270 = vmatmul.mubr.bf16.gmra.mrb[0].mxu0 %v173
    %v271 = vpop.f32.mrb[0].mxu0
    %v272 = vadd.f32 0.0, %v271
    %v273 = vpop.f32.mrb[0].mxu0
    %v274 = vpop.f32.mrb[0].mxu0
    %v275 = vadd.f32 0.0, %v274
    %v276 = vpop.f32.mrb[0].mxu0
    %277 = vmatprep.mubr.bf16.mxu0 0
    %278 = vmatmul.mubr.bf16.gmra.mrb[0].mxu0 %v174
    %v279 = vpop.f32.mrb[0].mxu0
    %v280 = vadd.f32 0.0, %v279
    %v281 = vpop.f32.mrb[0].mxu0
    %v282 = vpop.f32.mrb[0].mxu0
    %v283 = vadd.f32 0.0, %v282
    %v284 = vpop.f32.mrb[0].mxu0
    %285 = vmatprep.mubr.bf16.mxu0 0
    %286 = vmatmul.mubr.bf16.gmra.mrb[0].mxu0 %v175
    %v287 = vpop.f32.mrb[0].mxu0
    %v288 = vadd.f32 0.0, %v287
    %v289 = vpop.f32.mrb[0].mxu0
    %v290 = vpop.f32.mrb[0].mxu0
    %v291 = vadd.f32 0.0, %v290
    %v292 = vpop.f32.mrb[0].mxu0
    %293 = vmatprep.mubr.bf16.mxu0 0
    %294 = vmatmul.mubr.bf16.gmra.mrb[0].mxu0 %v176
    %v295 = vpop.f32.mrb[0].mxu0
    %v296 = vadd.f32 0.0, %v295
    %v297 = vpop.f32.mrb[0].mxu0
    %v298 = vpop.f32.mrb[0].mxu0
    %v299 = vadd.f32 0.0, %v298
    %v300 = vpop.f32.mrb[0].mxu0
    %301 = vmatprep.mubr.bf16.mxu0 0
    %302 = vmatmul.mubr.bf16.gmra.mrb[0].mxu0 %v177
    %v303 = vpop.f32.mrb[0].mxu0
    %v304 = vadd.f32 0.0, %v303
    %v305 = vpop.f32.mrb[0].mxu0
    %v306 = vpop.f32.mrb[0].mxu0
    %v307 = vadd.f32 0.0, %v306
    %v308 = vpop.f32.mrb[0].mxu0
    %309 = vmatprep.mubr.bf16.mxu0 0
    %310 = vmatmul.mubr.bf16.gmra.mrb[0].mxu0 %v178
    %v311 = vpop.f32.mrb[0].mxu0
    %v312 = vadd.f32 0.0, %v311
    %v313 = vpop.f32.mrb[0].mxu0
    %v314 = vpop.f32.mrb[0].mxu0
    %v315 = vadd.f32 0.0, %v314
    %v316 = vpop.f32.mrb[0].mxu0
    %317 = vmatprep.mubr.bf16.mxu0 0
    %318 = vmatmul.mubr.bf16.gmra.mrb[0].mxu0 %v179
    %v319 = vpop.f32.mrb[0].mxu0
    %v320 = vadd.f32 0.0, %v319
    %v321 = vpop.f32.mrb[0].mxu0
    %v322 = vpop.f32.mrb[0].mxu0
    %v323 = vadd.f32 0.0, %v322
    %v324 = vpop.f32.mrb[0].mxu0
    %325 = vmatprep.mubr.bf16.mxu0 0
    %326 = vmatmul.mubr.bf16.gmra.mrb[0].mxu0 %v180
    %v327 = vpop.f32.mrb[0].mxu0
    %v328 = vadd.f32 0.0, %v327
    %v329 = vpop.f32.mrb[0].mxu0
    %v330 = vpop.f32.mrb[0].mxu0
    %v331 = vadd.f32 0.0, %v330
    %v332 = vpop.f32.mrb[0].mxu0
    %333 = vdwg.mxu0
    %v350 = vunpack.c.l.b16 %v77
    %v351 = vunpack.c.l.b16 %v78
    %v352 = vunpack.c.l.b16 %v79
    %v353 = vunpack.c.l.b16 %v80
    %v354 = vunpack.c.l.b16 %v81
    %v355 = vunpack.c.l.b16 %v82
    %v356 = vunpack.c.l.b16 %v83
    %v357 = vunpack.c.l.b16 %v84
    %v358 = vunpack.c.l.b16 %v85
    %v359 = vunpack.c.l.b16 %v86
    %v360 = vunpack.c.l.b16 %v87
    %v361 = vunpack.c.l.b16 %v88
    %v362 = vunpack.c.l.b16 %v89
    %v363 = vunpack.c.l.b16 %v90
    %v364 = vunpack.c.l.b16 %v91
    %v365 = vunpack.c.l.b16 %v92
    %v366 = vpack.c.b16 %v351, %v350
    %v367 = vpack.c.b16 %v353, %v352
    %v368 = vpack.c.b16 %v355, %v354
    %v369 = vpack.c.b16 %v357, %v356
    %v370 = vpack.c.b16 %v359, %v358
    %v371 = vpack.c.b16 %v361, %v360
    %v372 = vpack.c.b16 %v363, %v362
    %v373 = vpack.c.b16 %v365, %v364
    %v398 = vunpack.c.l.b16 %v93
    %v399 = vunpack.c.l.b16 %v94
    %v400 = vunpack.c.l.b16 %v95
    %v401 = vunpack.c.l.b16 %v96
    %v402 = vunpack.c.l.b16 %v97
    %v403 = vunpack.c.l.b16 %v98
    %v404 = vunpack.c.l.b16 %v99
    %v405 = vunpack.c.l.b16 %v100
    %v406 = vunpack.c.l.b16 %v101
    %v407 = vunpack.c.l.b16 %v102
    %v408 = vunpack.c.l.b16 %v103
    %v409 = vunpack.c.l.b16 %v104
    %v410 = vunpack.c.l.b16 %v105
    %v411 = vunpack.c.l.b16 %v106
    %v412 = vunpack.c.l.b16 %v107
    %v413 = vunpack.c.l.b16 %v108
    %v414 = vpack.c.b16 %v399, %v398
    %v415 = vpack.c.b16 %v401, %v400
    %v416 = vpack.c.b16 %v403, %v402
    %v417 = vpack.c.b16 %v405, %v404
    %v418 = vpack.c.b16 %v407, %v406
    %v419 = vpack.c.b16 %v409, %v408
    %v420 = vpack.c.b16 %v411, %v410
    %v421 = vpack.c.b16 %v413, %v412
    %430 = vmatprep.subr.bf16.mxu0 0
    %431 = vmatpush1.bf16.msra.mxu0 %v414
    %432 = vmatprep.subr.bf16.mxu0 0
    %433 = vmatpush1.bf16.msra.mxu0 %v415
    %434 = vmatprep.subr.bf16.mxu0 0
    %435 = vmatpush1.bf16.msra.mxu0 %v416
    %436 = vmatprep.subr.bf16.mxu0 0
    %437 = vmatpush1.bf16.msra.mxu0 %v417
    %438 = vmatprep.subr.bf16.mxu0 0
    %439 = vmatpush1.bf16.msra.mxu0 %v418
    %440 = vmatprep.subr.bf16.mxu0 0
    %441 = vmatpush1.bf16.msra.mxu0 %v419
    %442 = vmatprep.subr.bf16.mxu0 0
    %443 = vmatpush1.bf16.msra.mxu0 %v420
    %444 = vmatprep.subr.bf16.mxu0 0
    %445 = vmatpush1.bf16.msra.mxu0 %v421
    %446 = vmatprep.subr.bf16.mxu0 0
    %447 = vmatpush1.bf16.msra.mxu0 0
    %448 = vmatprep.subr.bf16.mxu0 0
    %449 = vmatpush1.bf16.msra.mxu0 0
    %450 = vmatprep.subr.bf16.mxu0 0
    %451 = vmatpush1.bf16.msra.mxu0 0
    %452 = vmatprep.subr.bf16.mxu0 0
    %453 = vmatpush1.bf16.msra.mxu0 0
    %454 = vmatprep.subr.bf16.mxu0 0
    %455 = vmatpush1.bf16.msra.mxu0 0
    %456 = vmatprep.subr.bf16.mxu0 0
    %457 = vmatpush1.bf16.msra.mxu0 0
    %458 = vmatprep.subr.bf16.mxu0 0
    %459 = vmatpush1.bf16.msra.mxu0 0
    %460 = vmatprep.subr.bf16.mxu0 0
    %461 = vmatpush1.bf16.msra.mxu0 0
    %462 = vmatprep.mubr.bf16.mxu0 0
    %463 = vmatmul.mubr.bf16.gmra.mrb[0].mxu0 %v366
    %v464 = vpop.f32.mrb[0].mxu0
    %v465 = vadd.f32 %v272, %v464
    %v466 = vpop.f32.mrb[0].mxu0
    %v467 = vpop.f32.mrb[0].mxu0
    %v468 = vadd.f32 %v275, %v467
    %v469 = vpop.f32.mrb[0].mxu0
    %470 = vmatprep.mubr.bf16.mxu0 0
    %471 = vmatmul.mubr.bf16.gmra.mrb[0].mxu0 %v367
    %v472 = vpop.f32.mrb[0].mxu0
    %v473 = vadd.f32 %v280, %v472
    %v474 = vpop.f32.mrb[0].mxu0
    %v475 = vpop.f32.mrb[0].mxu0
    %v476 = vadd.f32 %v283, %v475
    %v477 = vpop.f32.mrb[0].mxu0
    %478 = vmatprep.mubr.bf16.mxu0 0
    %479 = vmatmul.mubr.bf16.gmra.mrb[0].mxu0 %v368
    %v480 = vpop.f32.mrb[0].mxu0
    %v481 = vadd.f32 %v288, %v480
    %v482 = vpop.f32.mrb[0].mxu0
    %v483 = vpop.f32.mrb[0].mxu0
    %v484 = vadd.f32 %v291, %v483
    %v485 = vpop.f32.mrb[0].mxu0
    %486 = vmatprep.mubr.bf16.mxu0 0
    %487 = vmatmul.mubr.bf16.gmra.mrb[0].mxu0 %v369
    %v488 = vpop.f32.mrb[0].mxu0
    %v489 = vadd.f32 %v296, %v488
    %v490 = vpop.f32.mrb[0].mxu0
    %v491 = vpop.f32.mrb[0].mxu0
    %v492 = vadd.f32 %v299, %v491
    %v493 = vpop.f32.mrb[0].mxu0
    %494 = vmatprep.mubr.bf16.mxu0 0
    %495 = vmatmul.mubr.bf16.gmra.mrb[0].mxu0 %v370
    %v496 = vpop.f32.mrb[0].mxu0
    %v497 = vadd.f32 %v304, %v496
    %v498 = vpop.f32.mrb[0].mxu0
    %v499 = vpop.f32.mrb[0].mxu0
    %v500 = vadd.f32 %v307, %v499
    %v501 = vpop.f32.mrb[0].mxu0
    %502 = vmatprep.mubr.bf16.mxu0 0
    %503 = vmatmul.mubr.bf16.gmra.mrb[0].mxu0 %v371
    %v504 = vpop.f32.mrb[0].mxu0
    %v505 = vadd.f32 %v312, %v504
    %v506 = vpop.f32.mrb[0].mxu0
    %v507 = vpop.f32.mrb[0].mxu0
    %v508 = vadd.f32 %v315, %v507
    %v509 = vpop.f32.mrb[0].mxu0
    %510 = vmatprep.mubr.bf16.mxu0 0
    %511 = vmatmul.mubr.bf16.gmra.mrb[0].mxu0 %v372
    %v512 = vpop.f32.mrb[0].mxu0
    %v513 = vadd.f32 %v320, %v512
    %v514 = vpop.f32.mrb[0].mxu0
    %v515 = vpop.f32.mrb[0].mxu0
    %v516 = vadd.f32 %v323, %v515
    %v517 = vpop.f32.mrb[0].mxu0
    %518 = vmatprep.mubr.bf16.mxu0 0
    %519 = vmatmul.mubr.bf16.gmra.mrb[0].mxu0 %v373
    %v520 = vpop.f32.mrb[0].mxu0
    %v521 = vadd.f32 %v328, %v520
    %v522 = vpop.f32.mrb[0].mxu0
    %v523 = vpop.f32.mrb[0].mxu0
    %v524 = vadd.f32 %v331, %v523
    %v525 = vpop.f32.mrb[0].mxu0
    %526 = vdwg.mxu0
    %v527 = vld [vmem:[%s4] sm:$0x1]
    %v529 = vlaneseq
    %v530 = vshrl.u32 %v529, 7
    %v531 = vsub.s32 0, %v530
    %v532 = vrot.slane %v527, %v531
    %v534 = vadd.f32 %v465, %v532
    %v535 = vadd.f32 %v468, %v532
    %v536 = vadd.f32 %v473, %v532
    %v537 = vadd.f32 %v476, %v532
    %v538 = vadd.f32 %v481, %v532
    %v539 = vadd.f32 %v484, %v532
    %v540 = vadd.f32 %v489, %v532
    %v541 = vadd.f32 %v492, %v532
    %v542 = vadd.f32 %v497, %v532
    %v543 = vadd.f32 %v500, %v532
    %v544 = vadd.f32 %v505, %v532
    %v545 = vadd.f32 %v508, %v532
    %v546 = vadd.f32 %v513, %v532
    %v547 = vadd.f32 %v516, %v532
    %v548 = vadd.f32 %v521, %v532
    %v549 = vadd.f32 %v524, %v532
    %v550 = vmax.f32 %v534, 0.0
    %v551 = vmax.f32 %v535, 0.0
    %v552 = vmax.f32 %v536, 0.0
    %v553 = vmax.f32 %v537, 0.0
    %v554 = vmax.f32 %v538, 0.0
    %v555 = vmax.f32 %v539, 0.0
    %v556 = vmax.f32 %v540, 0.0
    %v557 = vmax.f32 %v541, 0.0
    %v558 = vmax.f32 %v542, 0.0
    %v559 = vmax.f32 %v543, 0.0
    %v560 = vmax.f32 %v544, 0.0
    %v561 = vmax.f32 %v545, 0.0
    %v562 = vmax.f32 %v546, 0.0
    %v563 = vmax.f32 %v547, 0.0
    %v564 = vmax.f32 %v548, 0.0
    %v565 = vmax.f32 %v549, 0.0
    %v566 = vpack.c.bf16 %v551, %v550
    %v567 = vpack.c.bf16 %v553, %v552
    %v568 = vpack.c.bf16 %v555, %v554
    %v569 = vpack.c.bf16 %v557, %v556
    %v570 = vpack.c.bf16 %v559, %v558
    %v571 = vpack.c.bf16 %v561, %v560
    %v572 = vpack.c.bf16 %v563, %v562
    %v573 = vpack.c.bf16 %v565, %v564
    %v574 = vld [vmem:[%s5] sm:$0xf]
    %v575 = vld [vmem:[%s5 + $0x4] sm:$0xf]
    %v576 = vld [vmem:[%s5 + $0x8] sm:$0xf]
    %v577 = vld [vmem:[%s5 + $0xc] sm:$0xf]
    %v578 = vld [vmem:[%s5 + $0x10] sm:$0xf]
    %v579 = vld [vmem:[%s5 + $0x14] sm:$0xf]
    %v580 = vld [vmem:[%s5 + $0x18] sm:$0xf]
    %v581 = vld [vmem:[%s5 + $0x1c] sm:$0xf]
    %v582 = vld [vmem:[%s5 + $0x20] sm:$0xf]
    %v583 = vld [vmem:[%s5 + $0x24] sm:$0xf]
    %v584 = vld [vmem:[%s5 + $0x28] sm:$0xf]
    %v585 = vld [vmem:[%s5 + $0x2c] sm:$0xf]
    %v586 = vld [vmem:[%s5 + $0x30] sm:$0xf]
    %v587 = vld [vmem:[%s5 + $0x34] sm:$0xf]
    %v588 = vld [vmem:[%s5 + $0x38] sm:$0xf]
    %v589 = vld [vmem:[%s5 + $0x3c] sm:$0xf]
    %v590 = vld [vmem:[%s6] sm:$0x1]
    %v592 = vlaneseq
    %v593 = vshrl.u32 %v592, 7
    %v594 = vsub.s32 0, %v593
    %v595 = vrot.slane %v590, %v594
    %v613 = vunpack.c.l.b16 %v574
    %v614 = vunpack.c.l.b16 %v575
    %v615 = vunpack.c.l.b16 %v576
    %v616 = vunpack.c.l.b16 %v577
    %v617 = vunpack.c.l.b16 %v578
    %v618 = vunpack.c.l.b16 %v579
    %v619 = vunpack.c.l.b16 %v580
    %v620 = vunpack.c.l.b16 %v581
    %v621 = vunpack.c.l.b16 %v582
    %v622 = vunpack.c.l.b16 %v583
    %v623 = vunpack.c.l.b16 %v584
    %v624 = vunpack.c.l.b16 %v585
    %v625 = vunpack.c.l.b16 %v586
    %v626 = vunpack.c.l.b16 %v587
    %v627 = vunpack.c.l.b16 %v588
    %v628 = vunpack.c.l.b16 %v589
    %v629 = vpack.c.b16 %v614, %v613
    %v630 = vpack.c.b16 %v616, %v615
    %v631 = vpack.c.b16 %v618, %v617
    %v632 = vpack.c.b16 %v620, %v619
    %v633 = vpack.c.b16 %v622, %v621
    %v634 = vpack.c.b16 %v624, %v623
    %v635 = vpack.c.b16 %v626, %v625
    %v636 = vpack.c.b16 %v628, %v627
    %645 = vmatprep.subr.bf16.mxu0 0
    %646 = vmatpush1.bf16.msra.mxu0 %v629
    %647 = vmatprep.subr.bf16.mxu0 0
    %648 = vmatpush1.bf16.msra.mxu0 %v630
    %649 = vmatprep.subr.bf16.mxu0 0
    %650 = vmatpush1.bf16.msra.mxu0 %v631
    %651 = vmatprep.subr.bf16.mxu0 0
    %652 = vmatpush1.bf16.msra.mxu0 %v632
    %653 = vmatprep.subr.bf16.mxu0 0
    %654 = vmatpush1.bf16.msra.mxu0 %v633
    %655 = vmatprep.subr.bf16.mxu0 0
    %656 = vmatpush1.bf16.msra.mxu0 %v634
    %657 = vmatprep.subr.bf16.mxu0 0
    %658 = vmatpush1.bf16.msra.mxu0 %v635
    %659 = vmatprep.subr.bf16.mxu0 0
    %660 = vmatpush1.bf16.msra.mxu0 %v636
    %661 = vmatprep.subr.bf16.mxu0 0
    %662 = vmatpush1.bf16.msra.mxu0 0
    %663 = vmatprep.subr.bf16.mxu0 0
    %664 = vmatpush1.bf16.msra.mxu0 0
    %665 = vmatprep.subr.bf16.mxu0 0
    %666 = vmatpush1.bf16.msra.mxu0 0
    %667 = vmatprep.subr.bf16.mxu0 0
    %668 = vmatpush1.bf16.msra.mxu0 0
    %669 = vmatprep.subr.bf16.mxu0 0
    %670 = vmatpush1.bf16.msra.mxu0 0
    %671 = vmatprep.subr.bf16.mxu0 0
    %672 = vmatpush1.bf16.msra.mxu0 0
    %673 = vmatprep.subr.bf16.mxu0 0
    %674 = vmatpush1.bf16.msra.mxu0 0
    %675 = vmatprep.subr.bf16.mxu0 0
    %676 = vmatpush1.bf16.msra.mxu0 0
    %677 = vmatprep.mubr.bf16.mxu0 0
    %678 = vmatmul.mubr.bf16.gmra.mrb[0].mxu0 %v566
    %v679 = vpop.f32.mrb[0].mxu0
    %v680 = vadd.f32 %v595, %v679
    %v681 = vpop.f32.mrb[0].mxu0
    %v682 = vpop.f32.mrb[0].mxu0
    %v683 = vadd.f32 %v595, %v682
    %v684 = vpop.f32.mrb[0].mxu0
    %685 = vmatprep.mubr.bf16.mxu0 0
    %686 = vmatmul.mubr.bf16.gmra.mrb[0].mxu0 %v567
    %v687 = vpop.f32.mrb[0].mxu0
    %v688 = vadd.f32 %v595, %v687
    %v689 = vpop.f32.mrb[0].mxu0
    %v690 = vpop.f32.mrb[0].mxu0
    %v691 = vadd.f32 %v595, %v690
    %v692 = vpop.f32.mrb[0].mxu0
    %693 = vmatprep.mubr.bf16.mxu0 0
    %694 = vmatmul.mubr.bf16.gmra.mrb[0].mxu0 %v568
    %v695 = vpop.f32.mrb[0].mxu0
    %v696 = vadd.f32 %v595, %v695
    %v697 = vpop.f32.mrb[0].mxu0
    %v698 = vpop.f32.mrb[0].mxu0
    %v699 = vadd.f32 %v595, %v698
    %v700 = vpop.f32.mrb[0].mxu0
    %701 = vmatprep.mubr.bf16.mxu0 0
    %702 = vmatmul.mubr.bf16.gmra.mrb[0].mxu0 %v569
    %v703 = vpop.f32.mrb[0].mxu0
    %v704 = vadd.f32 %v595, %v703
    %v705 = vpop.f32.mrb[0].mxu0
    %v706 = vpop.f32.mrb[0].mxu0
    %v707 = vadd.f32 %v595, %v706
    %v708 = vpop.f32.mrb[0].mxu0
    %709 = vmatprep.mubr.bf16.mxu0 0
    %710 = vmatmul.mubr.bf16.gmra.mrb[0].mxu0 %v570
    %v711 = vpop.f32.mrb[0].mxu0
    %v712 = vadd.f32 %v595, %v711
    %v713 = vpop.f32.mrb[0].mxu0
    %v714 = vpop.f32.mrb[0].mxu0
    %v715 = vadd.f32 %v595, %v714
    %v716 = vpop.f32.mrb[0].mxu0
    %717 = vmatprep.mubr.bf16.mxu0 0
    %718 = vmatmul.mubr.bf16.gmra.mrb[0].mxu0 %v571
    %v719 = vpop.f32.mrb[0].mxu0
    %v720 = vadd.f32 %v595, %v719
    %v721 = vpop.f32.mrb[0].mxu0
    %v722 = vpop.f32.mrb[0].mxu0
    %v723 = vadd.f32 %v595, %v722
    %v724 = vpop.f32.mrb[0].mxu0
    %725 = vmatprep.mubr.bf16.mxu0 0
    %726 = vmatmul.mubr.bf16.gmra.mrb[0].mxu0 %v572
    %v727 = vpop.f32.mrb[0].mxu0
    %v728 = vadd.f32 %v595, %v727
    %v729 = vpop.f32.mrb[0].mxu0
    %v730 = vpop.f32.mrb[0].mxu0
    %v731 = vadd.f32 %v595, %v730
    %v732 = vpop.f32.mrb[0].mxu0
    %733 = vmatprep.mubr.bf16.mxu0 0
    %734 = vmatmul.mubr.bf16.gmra.mrb[0].mxu0 %v573
    %v735 = vpop.f32.mrb[0].mxu0
    %v736 = vadd.f32 %v595, %v735
    %v737 = vpop.f32.mrb[0].mxu0
    %v738 = vpop.f32.mrb[0].mxu0
    %v739 = vadd.f32 %v595, %v738
    %v740 = vpop.f32.mrb[0].mxu0
    %741 = vdwg.mxu0
    %v742 = vmax.f32 %v680, 0.0
    %v743 = vmax.f32 %v683, 0.0
    %v744 = vmax.f32 %v688, 0.0
    %v745 = vmax.f32 %v691, 0.0
    %v746 = vmax.f32 %v696, 0.0
    %v747 = vmax.f32 %v699, 0.0
    %v748 = vmax.f32 %v704, 0.0
    %v749 = vmax.f32 %v707, 0.0
    %v750 = vmax.f32 %v712, 0.0
    %v751 = vmax.f32 %v715, 0.0
    %v752 = vmax.f32 %v720, 0.0
    %v753 = vmax.f32 %v723, 0.0
    %v754 = vmax.f32 %v728, 0.0
    %v755 = vmax.f32 %v731, 0.0
    %v756 = vmax.f32 %v736, 0.0
    %v757 = vmax.f32 %v739, 0.0
    %v758 = vld [vmem:[%s7] sm:$0x1]
    %v759 = vld [vmem:[#allocation2] sm:$0x1]
    %761 = vset.pattern.permute.xlu0 0
    %762 = vperm.xlu0 %761, %v759
    %v763 = vpop.permute.xlu0 %762
    %v765 = vlaneseq
    %v766 = vshrl.u32 %v765, 7
    %v767 = vsub.s32 0, %v766
    %v768 = vrot.slane %v763, %v767
    %vm769 = vcmask 523264
    %v771 = vsel %vm769, %v758, 0
    %v774 = vsel %vm769, %v742, 0
    %v777 = vsel %vm769, %v743, 0
    %v780 = vsel %vm769, %v744, 0
    %v783 = vsel %vm769, %v745, 0
    %v786 = vsel %vm769, %v746, 0
    %v789 = vsel %vm769, %v747, 0
    %v792 = vsel %vm769, %v748, 0
    %v795 = vsel %vm769, %v749, 0
    %v798 = vsel %vm769, %v750, 0
    %v801 = vsel %vm769, %v751, 0
    %v804 = vsel %vm769, %v752, 0
    %v807 = vsel %vm769, %v753, 0
    %v810 = vsel %vm769, %v754, 0
    %v813 = vsel %vm769, %v755, 0
    %v816 = vsel %vm769, %v756, 0
    %v819 = vsel %vm769, %v757, 0
    %821 = vmatprep.subr.mxu0 0.0
    %822 = vmatpush1.xpose.msra.mxu0 %v774
    %823 = vmatprep.subr.mxu0 0.0
    %824 = vmatpush1.xpose.msra.mxu0 %v777
    %825 = vmatprep.subr.mxu0 0.0
    %826 = vmatpush1.xpose.msra.mxu0 %v780
    %827 = vmatprep.subr.mxu0 0.0
    %828 = vmatpush1.xpose.msra.mxu0 %v783
    %829 = vmatprep.subr.mxu0 0.0
    %830 = vmatpush1.xpose.msra.mxu0 %v786
    %831 = vmatprep.subr.mxu0 0.0
    %832 = vmatpush1.xpose.msra.mxu0 %v789
    %833 = vmatprep.subr.mxu0 0.0
    %834 = vmatpush1.xpose.msra.mxu0 %v792
    %835 = vmatprep.subr.mxu0 0.0
    %836 = vmatpush1.xpose.msra.mxu0 %v795
    %837 = vmatprep.subr.mxu0 0.0
    %838 = vmatpush1.xpose.msra.mxu0 %v798
    %839 = vmatprep.subr.mxu0 0.0
    %840 = vmatpush1.xpose.msra.mxu0 %v801
    %841 = vmatprep.subr.mxu0 0.0
    %842 = vmatpush1.xpose.msra.mxu0 %v804
    %843 = vmatprep.subr.mxu0 0.0
    %844 = vmatpush1.xpose.msra.mxu0 %v807
    %845 = vmatprep.subr.mxu0 0.0
    %846 = vmatpush1.xpose.msra.mxu0 %v810
    %847 = vmatprep.subr.mxu0 0.0
    %848 = vmatpush1.xpose.msra.mxu0 %v813
    %849 = vmatprep.subr.mxu0 0.0
    %850 = vmatpush1.xpose.msra.mxu0 %v816
    %851 = vmatprep.subr.mxu0 0.0
    %852 = vmatpush1.xpose.msra.mxu0 %v819
    %853 = vmatprep.subr.mxu0 0.0
    %854 = vmatpush1.xpose.msra.mxu0 0.0
    %855 = vmatprep.subr.mxu0 0.0
    %856 = vmatpush1.xpose.msra.mxu0 0.0
    %857 = vmatprep.subr.mxu0 0.0
    %858 = vmatpush1.xpose.msra.mxu0 0.0
    %859 = vmatprep.subr.mxu0 0.0
    %860 = vmatpush1.xpose.msra.mxu0 0.0
    %861 = vmatprep.subr.mxu0 0.0
    %862 = vmatpush1.xpose.msra.mxu0 0.0
    %863 = vmatprep.subr.mxu0 0.0
    %864 = vmatpush1.xpose.msra.mxu0 0.0
    %865 = vmatprep.subr.mxu0 0.0
    %866 = vmatpush1.xpose.msra.mxu0 0.0
    %867 = vmatprep.subr.mxu0 0.0
    %868 = vmatpush1.xpose.msra.mxu0 0.0
    %869 = vmatprep.subr.mxu0 0.0
    %870 = vmatpush1.xpose.msra.mxu0 0.0
    %871 = vmatprep.subr.mxu0 0.0
    %872 = vmatpush1.xpose.msra.mxu0 0.0
    %873 = vmatprep.subr.mxu0 0.0
    %874 = vmatpush1.xpose.msra.mxu0 0.0
    %875 = vmatprep.subr.mxu0 0.0
    %876 = vmatpush1.xpose.msra.mxu0 0.0
    %877 = vmatprep.subr.mxu0 0.0
    %878 = vmatpush1.xpose.msra.mxu0 0.0
    %879 = vmatprep.subr.mxu0 0.0
    %880 = vmatpush1.xpose.msra.mxu0 0.0
    %881 = vmatprep.subr.mxu0 0.0
    %882 = vmatpush1.xpose.msra.mxu0 0.0
    %883 = vmatprep.subr.mxu0 0.0
    %884 = vmatpush1.xpose.msra.mxu0 0.0
    %885 = vmatprep.mubr.f32.mxu0 0.0
    %886 = vmatmul.mubr.f32.gmra.mrb[0].mxu0 %v771
    %v887 = vpop.f32.mrb[0].mxu0
    %v888 = vadd.f32 %v768, %v887
    %v889 = vpop.f32.mrb[0].mxu0
    %890 = vdwg.mxu0
    %v891 = vxor.u32 %v888, 2147483648
    %v892 = vmul.f32 %v891, 1.442695
    %v893 = vpow.pop %v892
    %v894 = vadd.f32 %v893, 1.0
    %v895 = vrcp.pop %v894
    %v896 = vmul.f32 1.0, %v895
    %897 = vst [vmem:[#allocation9] sm:$0x1] %v896
    // Predicated region
    $region50: #{tpu_custom_call.1} parent=1 // pred_check
      _
    $region51: #{tpu_custom_call.1} parent=1 // pred_check_branch
      %899 = sbr.rel (0) target = $region53
    $region52: #{tpu_custom_call.1} parent=1 // pred_region
      %s901 = ssub.s32 16, 16
      %902 = vsyncadd [#allocation5], %s901
      %s904 = sshll.u32 [#allocation9], 4
      %s905 = int_to_ptr.vmem [resolvable:$true] %s904
      %907 = dma.vmem_to_hbm [thread:$0]  %s905, 16, %s9, [#allocation5]
    $region53: #{tpu_custom_call.1} parent=1 // pred_fallthru
      _
    // Predicated region
    $region54: #{tpu_custom_call.1} parent=1 // pred_check
      _
    $region55: #{tpu_custom_call.1} parent=1 // pred_check_branch
      %909 = sbr.rel (0) target = $region57
    $region56: #{tpu_custom_call.1} parent=1 // pred_region
      %910 = dma.done [#allocation5], 16
    $region57: #{tpu_custom_call.1} parent=1 // pred_fallthru
      _
    %911 = vsyncpa [#allocation4], 1
    %912 = vsyncpa [#allocation7], 1
    %913 = vsyncpa [#allocation5], 1

</llo_original>
